<compile_context>
chip_gen: v7x
topology: tpu7x:2x2x1
jax: 0.10.0
libtpu: 0.0.40
codegen_flags: <defaults>
</compile_context>

<pallas_src>
import functools

import jax
import jax.numpy as jnp
from jax.experimental import pallas as pl
from jax.experimental.pallas import tpu as pltpu


def _lane_shifted_taps(x2d, wmask_ref, W):
    """Build the (9*Cin, H*W) im2col operand for a 3x3 SAME conv.

    x2d:       (Cin, H*W) f32   -- one image, channels in sublanes, flat
                                   spatial (h*W + w) in lanes.
    wmask_ref: (3, H*W)   f32   -- wmask[kw, h*W+w] = 1 iff 0 <= w+kw-1 < W.
    Rows are ordered (kh, kw, ci).
    """
    cin, hw = x2d.shape
    # Zero fill of width W+1 on both sides: any tap that reads above row 0 or
    # below row H-1 lands in this zero region (h-boundary handled for free).
    pad = jnp.zeros((cin, W + 1), x2d.dtype)
    xa = jnp.concatenate([pad, x2d, pad], axis=-1)          # (Cin, HW + 2W + 2)

    rows = []
    for kh in range(3):
        for kw in range(3):
            # Static lane shift by (kh-1)*W + (kw-1).
            # (pltpu.roll along lanes is the XLU-native alternative; explicit
            #  slice keeps the shift semantics unambiguous.)
            off = (W + 1) + (kh - 1) * W + (kw - 1)
            tap = xa[:, off:off + hw]                       # (Cin, HW)
            # w-boundary mask kills the wrap into the neighbouring row.
            rows.append(tap * wmask_ref[kw:kw + 1, :])
    return jnp.concatenate(rows, axis=0)                    # (9*Cin, HW)


def _conv3x3_flat(x2d, w_ref, wmask_ref, W):
    """3x3 SAME conv of one (Cin, H*W) image; w_ref is (Cout, 9*Cin)."""
    patches = _lane_shifted_taps(x2d, wmask_ref, W)         # (9*Cin, HW)
    # Single MXU matmul per conv, K = 9*Cin, output lanes = H*W (dense).
    return jnp.dot(w_ref[...], patches, preferred_element_type=jnp.float32)


def _basic_block_kernel(x_ref, w1_ref, w2_ref, s1_ref, b1_ref, s2_ref, b2_ref,
                        mask_ref, o_ref, *, W):
    """Fused BasicBlock for one batch element.

    x_ref:  (1, Cin, H*W)     o_ref: (1, Cout, H*W)
    w*_ref: (Cout, 9*Cin)     s*/b*: (Cout, 1)      mask_ref: (3, H*W)
    """
    x2d = x_ref[0].astype(jnp.float32)                         # (Cin, HW)

    y = _conv3x3_flat(x2d, w1_ref, mask_ref, W)                # conv1
    y = jnp.maximum(y * s1_ref[...] + b1_ref[...], 0.0)        # bn1 + relu

    y = _conv3x3_flat(y, w2_ref, mask_ref, W)                  # conv2
    y = y * s2_ref[...] + b2_ref[...] + x2d                    # bn2 + residual

    o_ref[0] = jnp.maximum(y, 0.0).astype(o_ref.dtype)         # relu


def fold_bn(gamma, beta, mean, var, eps=1e-5):
    scale = gamma / jnp.sqrt(var + eps)
    bias = beta - mean * scale
    return scale, bias


def _boundary_masks(H, W):
    """wmask[kw, h*W + w] = 1.0 iff 0 <= w + kw - 1 < W."""
    w = jnp.arange(W)
    rows = [
        jnp.tile(((w + kw - 1 >= 0) & (w + kw - 1 < W)).astype(jnp.float32), H)
        for kw in range(3)
    ]
    return jnp.stack(rows)                                     # (3, H*W)


def basic_block_forward(x_nchw, params):
    """Full BasicBlock forward (stride=1, downsample=None). NCHW in/out."""
    N, C, H, W = x_nchw.shape
    HW = H * W
    Cout = params["w1"].shape[-1]
    assert Cout == C, "stride=1 / no-downsample BasicBlock requires Cin == Cout"

    # Native NCHW viewed as (N, C, H*W): free metadata reshape, lane-dense.
    x_flat = x_nchw.reshape(N, C, HW)

    # Conv weights HWIO (3,3,Cin,Cout) -> (Cout, 9*Cin), K ordered (kh, kw, ci).
    w1 = params["w1"].transpose(3, 0, 1, 2).reshape(Cout, 9 * C)
    w2 = params["w2"].transpose(3, 0, 1, 2).reshape(Cout, 9 * Cout)

    s1, b1 = fold_bn(params["bn1_gamma"], params["bn1_beta"],
                     params["bn1_mean"], params["bn1_var"])
    s2, b2 = fold_bn(params["bn2_gamma"], params["bn2_beta"],
                     params["bn2_mean"], params["bn2_var"])
    s1 = s1.reshape(Cout, 1).astype(jnp.float32)
    b1 = b1.reshape(Cout, 1).astype(jnp.float32)
    s2 = s2.reshape(Cout, 1).astype(jnp.float32)
    b2 = b2.reshape(Cout, 1).astype(jnp.float32)

    masks = _boundary_masks(H, W)

    kernel = functools.partial(_basic_block_kernel, W=W)
    invariant = lambda b: (0, 0)   # grid-invariant (weights / BN / masks)

    out = pl.pallas_call(
        kernel,
        out_shape=jax.ShapeDtypeStruct((N, Cout, HW), x_nchw.dtype),
        grid_spec=pltpu.PrefetchScalarGridSpec(
            num_scalar_prefetch=0,
            grid=(N,),
            in_specs=[
                pl.BlockSpec((1, C, HW), lambda b: (b, 0, 0)),   # x
                pl.BlockSpec((Cout, 9 * C), invariant),          # w1
                pl.BlockSpec((Cout, 9 * Cout), invariant),       # w2
                pl.BlockSpec((Cout, 1), invariant),              # bn1 scale
                pl.BlockSpec((Cout, 1), invariant),              # bn1 bias
                pl.BlockSpec((Cout, 1), invariant),              # bn2 scale
                pl.BlockSpec((Cout, 1), invariant),              # bn2 bias
                pl.BlockSpec((3, HW), invariant),                # boundary masks
            ],
            out_specs=pl.BlockSpec((1, Cout, HW), lambda b: (b, 0, 0)),
        ),
        compiler_params=pltpu.CompilerParams(
            dimension_semantics=("parallel",)),
    )(x_flat, w1, w2, s1, b1, s2, b2, masks)

    return out.reshape(N, Cout, H, W)


def _reference_forward(x_nchw, params):
    """Pure-JAX reference (lax conv, NCHW) for correctness checking."""
    def conv(inp, w_hwio):
        return jax.lax.conv_general_dilated(
            inp, w_hwio, window_strides=(1, 1), padding="SAME",
            dimension_numbers=("NCHW", "HWIO", "NCHW"))

    s1, b1 = fold_bn(params["bn1_gamma"], params["bn1_beta"],
                     params["bn1_mean"], params["bn1_var"])
    s2, b2 = fold_bn(params["bn2_gamma"], params["bn2_beta"],
                     params["bn2_mean"], params["bn2_var"])
    s1 = s1[None, :, None, None]
    b1 = b1[None, :, None, None]
    s2 = s2[None, :, None, None]
    b2 = b2[None, :, None, None]

    out = jnp.maximum(conv(x_nchw, params["w1"]) * s1 + b1, 0.0)
    out = conv(out, params["w2"]) * s2 + b2 + x_nchw
    return jnp.maximum(out, 0.0)


def make_params(key, inplanes, planes):
    k1, k2 = jax.random.split(key)
    w1 = jax.random.normal(k1, (3, 3, inplanes, planes), jnp.float32)
    w1 = w1 * (2.0 / (inplanes * 9)) ** 0.5
    w2 = jax.random.normal(k2, (3, 3, planes, planes), jnp.float32)
    w2 = w2 * (2.0 / (planes * 9)) ** 0.5

    c = jnp.arange(planes, dtype=jnp.float32)
    return {
        "w1": w1,
        "w2": w2,
        "bn1_gamma": 1.0 + 0.05 * c,
        "bn1_beta": 0.02 * c,
        "bn1_mean": 0.01 * c,
        "bn1_var": 1.0 + 0.1 * c,
        "bn2_gamma": 1.0 - 0.03 * c,
        "bn2_beta": -0.01 * c,
        "bn2_mean": 0.02 * c,
        "bn2_var": 1.0 + 0.05 * c,
    }


if __name__ == "__main__":
    key = jax.random.PRNGKey(0)
    kx, kp = jax.random.split(key)

    N, C, H, W = 2, 8, 16, 16  # inplanes == planes (stride=1, no downsample)
    x = jax.random.normal(kx, (N, C, H, W), jnp.float32)
    params = make_params(kp, inplanes=C, planes=C)

    out = jax.block_until_ready(basic_block_forward(x, params))
    ref = jax.block_until_ready(_reference_forward(x, params))

    assert out.shape == (N, C, H, W)
    assert jnp.allclose(out, ref, atol=5e-4, rtol=5e-4), "mismatch vs reference"

    print("KERNEL_OK")
</pallas_src>

<mosaic_0001>
module attributes {stable_mosaic.version = 11 : i64} {
  func.func @_basic_block_kernel(%arg0: i32, %arg1: memref<1x8x256xf32, #tpu.memory_space<vmem>>, %arg2: memref<8x72xf32, #tpu.memory_space<vmem>>, %arg3: memref<8x72xf32, #tpu.memory_space<vmem>>, %arg4: memref<8x1xf32, #tpu.memory_space<vmem>>, %arg5: memref<8x1xf32, #tpu.memory_space<vmem>>, %arg6: memref<8x1xf32, #tpu.memory_space<vmem>>, %arg7: memref<8x1xf32, #tpu.memory_space<vmem>>, %arg8: memref<3x256xf32, #tpu.memory_space<vmem>>, %arg9: memref<1x8x256xf32, #tpu.memory_space<vmem>>) attributes {dimension_semantics = [#tpu.dimension_semantics<parallel>], iteration_bounds = array<i64: 2>, scalar_prefetch = 0 : i64, scratch_operands = 0 : i64, tpu.core_type = #tpu.core_type<tc>, window_params = [{transform_indices = @transform_0, window_bounds = array<i64: 1, 8, 256>}, {pipeline_mode = #tpu.pipeline_mode<synchronous>, transform_indices = @transform_1, window_bounds = array<i64: 8, 72>}, {pipeline_mode = #tpu.pipeline_mode<synchronous>, transform_indices = @transform_2, window_bounds = array<i64: 8, 72>}, {pipeline_mode = #tpu.pipeline_mode<synchronous>, transform_indices = @transform_3, window_bounds = array<i64: 8, 1>}, {pipeline_mode = #tpu.pipeline_mode<synchronous>, transform_indices = @transform_4, window_bounds = array<i64: 8, 1>}, {pipeline_mode = #tpu.pipeline_mode<synchronous>, transform_indices = @transform_5, window_bounds = array<i64: 8, 1>}, {pipeline_mode = #tpu.pipeline_mode<synchronous>, transform_indices = @transform_6, window_bounds = array<i64: 8, 1>}, {pipeline_mode = #tpu.pipeline_mode<synchronous>, transform_indices = @transform_7, window_bounds = array<i64: 3, 256>}, {transform_indices = @transform_8, window_bounds = array<i64: 1, 8, 256>}]} {
    %c0 = arith.constant 0 : index
    %c0_0 = arith.constant 0 : index
    %c0_1 = arith.constant 0 : index
    %0 = vector.load %arg1[%c0, %c0_0, %c0_1] : memref<1x8x256xf32, #tpu.memory_space<vmem>>, vector<1x8x256xf32>
    %1 = vector.shape_cast %0 : vector<1x8x256xf32> to vector<8x256xf32>
    %cst = arith.constant 0.000000e+00 : f32
    %2 = vector.broadcast %cst : f32 to vector<8x17xf32>
    %3 = tpu.concatenate %2, %1, %2 in 1 : vector<8x17xf32>, vector<8x256xf32>, vector<8x17xf32> -> vector<8x290xf32>
    %4 = vector.extract_strided_slice %3 {offsets = [0, 0], sizes = [8, 256], strides = [1, 1]} : vector<8x290xf32> to vector<8x256xf32>
    %c0_2 = arith.constant 0 : index
    %c0_3 = arith.constant 0 : index
    %5 = vector.load %arg8[%c0_2, %c0_3] : memref<3x256xf32, #tpu.memory_space<vmem>>, vector<1x256xf32>
    %6 = vector.broadcast %5 : vector<1x256xf32> to vector<8x256xf32>
    %7 = arith.mulf %4, %6 : vector<8x256xf32>
    %8 = vector.extract_strided_slice %3 {offsets = [0, 1], sizes = [8, 256], strides = [1, 1]} : vector<8x290xf32> to vector<8x256xf32>
    %c1 = arith.constant 1 : index
    %c0_4 = arith.constant 0 : index
    %9 = vector.load %arg8[%c1, %c0_4] : memref<3x256xf32, #tpu.memory_space<vmem>>, vector<1x256xf32>
    %10 = vector.broadcast %9 : vector<1x256xf32> to vector<8x256xf32>
    %11 = arith.mulf %8, %10 : vector<8x256xf32>
    %12 = vector.extract_strided_slice %3 {offsets = [0, 2], sizes = [8, 256], strides = [1, 1]} : vector<8x290xf32> to vector<8x256xf32>
    %c2 = arith.constant 2 : index
    %c0_5 = arith.constant 0 : index
    %13 = vector.load %arg8[%c2, %c0_5] : memref<3x256xf32, #tpu.memory_space<vmem>>, vector<1x256xf32>
    %14 = vector.broadcast %13 : vector<1x256xf32> to vector<8x256xf32>
    %15 = arith.mulf %12, %14 : vector<8x256xf32>
    %16 = vector.extract_strided_slice %3 {offsets = [0, 16], sizes = [8, 256], strides = [1, 1]} : vector<8x290xf32> to vector<8x256xf32>
    %c0_6 = arith.constant 0 : index
    %c0_7 = arith.constant 0 : index
    %17 = vector.load %arg8[%c0_6, %c0_7] : memref<3x256xf32, #tpu.memory_space<vmem>>, vector<1x256xf32>
    %18 = vector.broadcast %17 : vector<1x256xf32> to vector<8x256xf32>
    %19 = arith.mulf %16, %18 : vector<8x256xf32>
    %20 = vector.extract_strided_slice %3 {offsets = [0, 17], sizes = [8, 256], strides = [1, 1]} : vector<8x290xf32> to vector<8x256xf32>
    %c1_8 = arith.constant 1 : index
    %c0_9 = arith.constant 0 : index
    %21 = vector.load %arg8[%c1_8, %c0_9] : memref<3x256xf32, #tpu.memory_space<vmem>>, vector<1x256xf32>
    %22 = vector.broadcast %21 : vector<1x256xf32> to vector<8x256xf32>
    %23 = arith.mulf %20, %22 : vector<8x256xf32>
    %24 = vector.extract_strided_slice %3 {offsets = [0, 18], sizes = [8, 256], strides = [1, 1]} : vector<8x290xf32> to vector<8x256xf32>
    %c2_10 = arith.constant 2 : index
    %c0_11 = arith.constant 0 : index
    %25 = vector.load %arg8[%c2_10, %c0_11] : memref<3x256xf32, #tpu.memory_space<vmem>>, vector<1x256xf32>
    %26 = vector.broadcast %25 : vector<1x256xf32> to vector<8x256xf32>
    %27 = arith.mulf %24, %26 : vector<8x256xf32>
    %28 = vector.extract_strided_slice %3 {offsets = [0, 32], sizes = [8, 256], strides = [1, 1]} : vector<8x290xf32> to vector<8x256xf32>
    %c0_12 = arith.constant 0 : index
    %c0_13 = arith.constant 0 : index
    %29 = vector.load %arg8[%c0_12, %c0_13] : memref<3x256xf32, #tpu.memory_space<vmem>>, vector<1x256xf32>
    %30 = vector.broadcast %29 : vector<1x256xf32> to vector<8x256xf32>
    %31 = arith.mulf %28, %30 : vector<8x256xf32>
    %32 = vector.extract_strided_slice %3 {offsets = [0, 33], sizes = [8, 256], strides = [1, 1]} : vector<8x290xf32> to vector<8x256xf32>
    %c1_14 = arith.constant 1 : index
    %c0_15 = arith.constant 0 : index
    %33 = vector.load %arg8[%c1_14, %c0_15] : memref<3x256xf32, #tpu.memory_space<vmem>>, vector<1x256xf32>
    %34 = vector.broadcast %33 : vector<1x256xf32> to vector<8x256xf32>
    %35 = arith.mulf %32, %34 : vector<8x256xf32>
    %36 = vector.extract_strided_slice %3 {offsets = [0, 34], sizes = [8, 256], strides = [1, 1]} : vector<8x290xf32> to vector<8x256xf32>
    %c2_16 = arith.constant 2 : index
    %c0_17 = arith.constant 0 : index
    %37 = vector.load %arg8[%c2_16, %c0_17] : memref<3x256xf32, #tpu.memory_space<vmem>>, vector<1x256xf32>
    %38 = vector.broadcast %37 : vector<1x256xf32> to vector<8x256xf32>
    %39 = arith.mulf %36, %38 : vector<8x256xf32>
    %40 = tpu.concatenate %7, %11, %15, %19, %23, %27, %31, %35, %39 in 0 : vector<8x256xf32>, vector<8x256xf32>, vector<8x256xf32>, vector<8x256xf32>, vector<8x256xf32>, vector<8x256xf32>, vector<8x256xf32>, vector<8x256xf32>, vector<8x256xf32> -> vector<72x256xf32>
    %c0_18 = arith.constant 0 : index
    %c0_19 = arith.constant 0 : index
    %41 = vector.load %arg2[%c0_18, %c0_19] : memref<8x72xf32, #tpu.memory_space<vmem>>, vector<8x72xf32>
    %cst_20 = arith.constant dense<0.000000e+00> : vector<8x256xf32>
    %42 = tpu.matmul %41, %40, %cst_20 {dimension_numbers = #tpu.dot_dimension_numbers<[1], [0], [0], [1], [0, 0, 1, 1], [], []>} : vector<8x72xf32>, vector<72x256xf32>, vector<8x256xf32> -> vector<8x256xf32>
    %c0_21 = arith.constant 0 : index
    %c0_22 = arith.constant 0 : index
    %43 = vector.load %arg4[%c0_21, %c0_22] : memref<8x1xf32, #tpu.memory_space<vmem>>, vector<8x1xf32>
    %44 = vector.broadcast %43 : vector<8x1xf32> to vector<8x256xf32>
    %45 = arith.mulf %42, %44 : vector<8x256xf32>
    %c0_23 = arith.constant 0 : index
    %c0_24 = arith.constant 0 : index
    %46 = vector.load %arg5[%c0_23, %c0_24] : memref<8x1xf32, #tpu.memory_space<vmem>>, vector<8x1xf32>
    %47 = vector.broadcast %46 : vector<8x1xf32> to vector<8x256xf32>
    %48 = arith.addf %45, %47 : vector<8x256xf32>
    %cst_25 = arith.constant 0.000000e+00 : f32
    %49 = vector.broadcast %cst_25 : f32 to vector<8x256xf32>
    %50 = arith.maximumf %48, %49 : vector<8x256xf32>
    %cst_26 = arith.constant 0.000000e+00 : f32
    %51 = vector.broadcast %cst_26 : f32 to vector<8x17xf32>
    %52 = tpu.concatenate %51, %50, %51 in 1 : vector<8x17xf32>, vector<8x256xf32>, vector<8x17xf32> -> vector<8x290xf32>
    %53 = vector.extract_strided_slice %52 {offsets = [0, 0], sizes = [8, 256], strides = [1, 1]} : vector<8x290xf32> to vector<8x256xf32>
    %c0_27 = arith.constant 0 : index
    %c0_28 = arith.constant 0 : index
    %54 = vector.load %arg8[%c0_27, %c0_28] : memref<3x256xf32, #tpu.memory_space<vmem>>, vector<1x256xf32>
    %55 = vector.broadcast %54 : vector<1x256xf32> to vector<8x256xf32>
    %56 = arith.mulf %53, %55 : vector<8x256xf32>
    %57 = vector.extract_strided_slice %52 {offsets = [0, 1], sizes = [8, 256], strides = [1, 1]} : vector<8x290xf32> to vector<8x256xf32>
    %c1_29 = arith.constant 1 : index
    %c0_30 = arith.constant 0 : index
    %58 = vector.load %arg8[%c1_29, %c0_30] : memref<3x256xf32, #tpu.memory_space<vmem>>, vector<1x256xf32>
    %59 = vector.broadcast %58 : vector<1x256xf32> to vector<8x256xf32>
    %60 = arith.mulf %57, %59 : vector<8x256xf32>
    %61 = vector.extract_strided_slice %52 {offsets = [0, 2], sizes = [8, 256], strides = [1, 1]} : vector<8x290xf32> to vector<8x256xf32>
    %c2_31 = arith.constant 2 : index
    %c0_32 = arith.constant 0 : index
    %62 = vector.load %arg8[%c2_31, %c0_32] : memref<3x256xf32, #tpu.memory_space<vmem>>, vector<1x256xf32>
    %63 = vector.broadcast %62 : vector<1x256xf32> to vector<8x256xf32>
    %64 = arith.mulf %61, %63 : vector<8x256xf32>
    %65 = vector.extract_strided_slice %52 {offsets = [0, 16], sizes = [8, 256], strides = [1, 1]} : vector<8x290xf32> to vector<8x256xf32>
    %c0_33 = arith.constant 0 : index
    %c0_34 = arith.constant 0 : index
    %66 = vector.load %arg8[%c0_33, %c0_34] : memref<3x256xf32, #tpu.memory_space<vmem>>, vector<1x256xf32>
    %67 = vector.broadcast %66 : vector<1x256xf32> to vector<8x256xf32>
    %68 = arith.mulf %65, %67 : vector<8x256xf32>
    %69 = vector.extract_strided_slice %52 {offsets = [0, 17], sizes = [8, 256], strides = [1, 1]} : vector<8x290xf32> to vector<8x256xf32>
    %c1_35 = arith.constant 1 : index
    %c0_36 = arith.constant 0 : index
    %70 = vector.load %arg8[%c1_35, %c0_36] : memref<3x256xf32, #tpu.memory_space<vmem>>, vector<1x256xf32>
    %71 = vector.broadcast %70 : vector<1x256xf32> to vector<8x256xf32>
    %72 = arith.mulf %69, %71 : vector<8x256xf32>
    %73 = vector.extract_strided_slice %52 {offsets = [0, 18], sizes = [8, 256], strides = [1, 1]} : vector<8x290xf32> to vector<8x256xf32>
    %c2_37 = arith.constant 2 : index
    %c0_38 = arith.constant 0 : index
    %74 = vector.load %arg8[%c2_37, %c0_38] : memref<3x256xf32, #tpu.memory_space<vmem>>, vector<1x256xf32>
    %75 = vector.broadcast %74 : vector<1x256xf32> to vector<8x256xf32>
    %76 = arith.mulf %73, %75 : vector<8x256xf32>
    %77 = vector.extract_strided_slice %52 {offsets = [0, 32], sizes = [8, 256], strides = [1, 1]} : vector<8x290xf32> to vector<8x256xf32>
    %c0_39 = arith.constant 0 : index
    %c0_40 = arith.constant 0 : index
    %78 = vector.load %arg8[%c0_39, %c0_40] : memref<3x256xf32, #tpu.memory_space<vmem>>, vector<1x256xf32>
    %79 = vector.broadcast %78 : vector<1x256xf32> to vector<8x256xf32>
    %80 = arith.mulf %77, %79 : vector<8x256xf32>
    %81 = vector.extract_strided_slice %52 {offsets = [0, 33], sizes = [8, 256], strides = [1, 1]} : vector<8x290xf32> to vector<8x256xf32>
    %c1_41 = arith.constant 1 : index
    %c0_42 = arith.constant 0 : index
    %82 = vector.load %arg8[%c1_41, %c0_42] : memref<3x256xf32, #tpu.memory_space<vmem>>, vector<1x256xf32>
    %83 = vector.broadcast %82 : vector<1x256xf32> to vector<8x256xf32>
    %84 = arith.mulf %81, %83 : vector<8x256xf32>
    %85 = vector.extract_strided_slice %52 {offsets = [0, 34], sizes = [8, 256], strides = [1, 1]} : vector<8x290xf32> to vector<8x256xf32>
    %c2_43 = arith.constant 2 : index
    %c0_44 = arith.constant 0 : index
    %86 = vector.load %arg8[%c2_43, %c0_44] : memref<3x256xf32, #tpu.memory_space<vmem>>, vector<1x256xf32>
    %87 = vector.broadcast %86 : vector<1x256xf32> to vector<8x256xf32>
    %88 = arith.mulf %85, %87 : vector<8x256xf32>
    %89 = tpu.concatenate %56, %60, %64, %68, %72, %76, %80, %84, %88 in 0 : vector<8x256xf32>, vector<8x256xf32>, vector<8x256xf32>, vector<8x256xf32>, vector<8x256xf32>, vector<8x256xf32>, vector<8x256xf32>, vector<8x256xf32>, vector<8x256xf32> -> vector<72x256xf32>
    %c0_45 = arith.constant 0 : index
    %c0_46 = arith.constant 0 : index
    %90 = vector.load %arg3[%c0_45, %c0_46] : memref<8x72xf32, #tpu.memory_space<vmem>>, vector<8x72xf32>
    %cst_47 = arith.constant dense<0.000000e+00> : vector<8x256xf32>
    %91 = tpu.matmul %90, %89, %cst_47 {dimension_numbers = #tpu.dot_dimension_numbers<[1], [0], [0], [1], [0, 0, 1, 1], [], []>} : vector<8x72xf32>, vector<72x256xf32>, vector<8x256xf32> -> vector<8x256xf32>
    %c0_48 = arith.constant 0 : index
    %c0_49 = arith.constant 0 : index
    %92 = vector.load %arg6[%c0_48, %c0_49] : memref<8x1xf32, #tpu.memory_space<vmem>>, vector<8x1xf32>
    %93 = vector.broadcast %92 : vector<8x1xf32> to vector<8x256xf32>
    %94 = arith.mulf %91, %93 : vector<8x256xf32>
    %c0_50 = arith.constant 0 : index
    %c0_51 = arith.constant 0 : index
    %95 = vector.load %arg7[%c0_50, %c0_51] : memref<8x1xf32, #tpu.memory_space<vmem>>, vector<8x1xf32>
    %96 = vector.broadcast %95 : vector<8x1xf32> to vector<8x256xf32>
    %97 = arith.addf %94, %96 : vector<8x256xf32>
    %98 = arith.addf %97, %1 : vector<8x256xf32>
    %cst_52 = arith.constant 0.000000e+00 : f32
    %99 = vector.broadcast %cst_52 : f32 to vector<8x256xf32>
    %100 = arith.maximumf %98, %99 : vector<8x256xf32>
    %c0_53 = arith.constant 0 : index
    %c0_54 = arith.constant 0 : index
    %c0_55 = arith.constant 0 : index
    %101 = vector.load %arg9[%c0_53, %c0_54, %c0_55] : memref<1x8x256xf32, #tpu.memory_space<vmem>>, vector<1x8x256xf32>
    %102 = vector.shape_cast %101 : vector<1x8x256xf32> to vector<8x256xf32>
    %103 = vector.shape_cast %100 : vector<8x256xf32> to vector<1x8x256xf32>
    tpu.vector_store %arg9[%c0_53, %c0_54, %c0_55], %103 {strides = array<i32>} : memref<1x8x256xf32, #tpu.memory_space<vmem>>, vector<1x8x256xf32>,
    return
  }
  func.func @transform_0(%arg0: i32) -> (i32, i32, i32) {
    %c0_i32 = arith.constant 0 : i32
    %c0_i32_0 = arith.constant 0 : i32
    %c0_i32_1 = arith.constant 0 : i32
    return %arg0, %c0_i32, %c0_i32_0 : i32, i32, i32
  }
  func.func @transform_1(%arg0: i32) -> (i32, i32) {
    %c0_i32 = arith.constant 0 : i32
    %c0_i32_0 = arith.constant 0 : i32
    %c0_i32_1 = arith.constant 0 : i32
    return %c0_i32, %c0_i32_0 : i32, i32
  }
  func.func @transform_2(%arg0: i32) -> (i32, i32) {
    %c0_i32 = arith.constant 0 : i32
    %c0_i32_0 = arith.constant 0 : i32
    %c0_i32_1 = arith.constant 0 : i32
    return %c0_i32, %c0_i32_0 : i32, i32
  }
  func.func @transform_3(%arg0: i32) -> (i32, i32) {
    %c0_i32 = arith.constant 0 : i32
    %c0_i32_0 = arith.constant 0 : i32
    %c0_i32_1 = arith.constant 0 : i32
    return %c0_i32, %c0_i32_0 : i32, i32
  }
  func.func @transform_4(%arg0: i32) -> (i32, i32) {
    %c0_i32 = arith.constant 0 : i32
    %c0_i32_0 = arith.constant 0 : i32
    %c0_i32_1 = arith.constant 0 : i32
    return %c0_i32, %c0_i32_0 : i32, i32
  }
  func.func @transform_5(%arg0: i32) -> (i32, i32) {
    %c0_i32 = arith.constant 0 : i32
    %c0_i32_0 = arith.constant 0 : i32
    %c0_i32_1 = arith.constant 0 : i32
    return %c0_i32, %c0_i32_0 : i32, i32
  }
  func.func @transform_6(%arg0: i32) -> (i32, i32) {
    %c0_i32 = arith.constant 0 : i32
    %c0_i32_0 = arith.constant 0 : i32
    %c0_i32_1 = arith.constant 0 : i32
    return %c0_i32, %c0_i32_0 : i32, i32
  }
  func.func @transform_7(%arg0: i32) -> (i32, i32) {
    %c0_i32 = arith.constant 0 : i32
    %c0_i32_0 = arith.constant 0 : i32
    %c0_i32_1 = arith.constant 0 : i32
    return %c0_i32, %c0_i32_0 : i32, i32
  }
  func.func @transform_8(%arg0: i32) -> (i32, i32, i32) {
    %c0_i32 = arith.constant 0 : i32
    %c0_i32_0 = arith.constant 0 : i32
    %c0_i32_1 = arith.constant 0 : i32
    return %arg0, %c0_i32, %c0_i32_0 : i32, i32, i32
  }
}

</mosaic_0001>

<llo_original>
// kernel: tpu_custom_call.1
$region0: #{tpu_custom_call.1}
  #allocation0 [shape = 'u32[]', space=smem, size = 0x4, offset = 0x4, fixed_abs, tag = 'smem constant byte address 0x4 - core index']
  #allocation1 [shape = 'u32[144,128]{1,0:T(1,128)}', space=vmem, size = 0x12000, scoped, tag = 'internal scratch']
  %s0 = inlined_call_operand.vmem [shape: f32[2,8,256], index: 0, kind: input, shape index: {}]
  %s1 = inlined_call_operand.hbm [shape: f32[8,72], index: 1, kind: input, shape index: {}]
  %s2 = inlined_call_operand.vmem [shape: f32[8,72], index: 2, kind: input, shape index: {}]
  %s3 = inlined_call_operand.vmem [shape: f32[8,1], index: 3, kind: input, shape index: {}]
  %s4 = inlined_call_operand.vmem [shape: f32[8,1], index: 4, kind: input, shape index: {}]
  %s5 = inlined_call_operand.vmem [shape: f32[8,1], index: 5, kind: input, shape index: {}]
  %s6 = inlined_call_operand.vmem [shape: f32[8,1], index: 6, kind: input, shape index: {}]
  %s7 = inlined_call_operand.vmem [shape: f32[3,256], index: 7, kind: input, shape index: {}]
  %s8 = inlined_call_operand.hbm [shape: f32[2,8,256], index: 8, kind: output, shape index: {}]
  %s9 = sld [smem:[#allocation0]]
  $region69: #{tpu_custom_call.1} parent=0
    _
  %s11 = ssub.s32 1, %s9
  %s12 = scalar_select 0, %s11, %s9
  $region1: #{tpu_custom_call.1} parent=0
    #allocation2 [shape = 'u8[4096]{0}', space=vmem, size = 0x1000, scoped, tag = 'input window, operand 1, single buffered']
    #allocation3 [shape = 's32[2]{0}', space=sflag, size = 0x8, scoped, tag = 'scoped memory for tpu_custom_call.1']
    #allocation4 [shape = 's32[2]{0}', space=sflag, size = 0x8, scoped, tag = 'scoped memory for tpu_custom_call.1']
    #allocation5 [shape = 'u8[16384]{0}', space=vmem, size = 0x4000, scoped, tag = 'output window, operand 0']
    %13 = vsyncpa [#allocation3], 0
    %14 = vsyncpa [#allocation4], 0
    %s15 = scalar_lea.sflag [#allocation4], 1
    %16 = vsyncpa %s15, 0
    loop: start=0, step=1, limit=4
    $region2: #{tpu_custom_call.1} parent=1 // loop_pre_header
      _
    $region3: #{tpu_custom_call.1} parent=1 // loop_header
      %s18 = sphi 0, %s22
      %p19 = scmp.ge.s32.totalorder %s18, 4
      %s28 = sphi 0, %s30
      %s31 = sphi 0, %s28
      %s32 = sphi 0, %s31
      %s48 = sphi 0, %s32
      %s52 = sphi 0, %s52
      %s54 = sphi 0, %s52
      %s55 = sphi 0, %s54
      %s69 = sphi 0, %s55
      %s73 = sphi 0, %s73
      %s75 = sphi 0, %s73
      %s76 = sphi 0, %s75
      %s90 = sphi 0, %s76
      %s94 = sphi 0, %s94
      %s96 = sphi 0, %s94
      %s97 = sphi 0, %s96
      %s111 = sphi 0, %s97
      %s115 = sphi 0, %s115
      %s117 = sphi 0, %s115
      %s118 = sphi 0, %s117
      %s132 = sphi 0, %s118
      %s136 = sphi 0, %s136
      %s138 = sphi 0, %s136
      %s139 = sphi 0, %s138
      %s153 = sphi 0, %s139
      %s157 = sphi 0, %s157
      %s159 = sphi 0, %s157
      %s160 = sphi 0, %s159
      %s174 = sphi 0, %s160
      %s178 = sphi 0, %s178
      %s180 = sphi 0, %s178
      %s181 = sphi 0, %s180
      %s195 = sphi 0, %s181
      %s201 = sphi 0, %s203
      %s204 = sphi 0, %s201
      %s205 = sphi 0, %s204
      %s221 = sphi 0, %s205
    $region4: #{tpu_custom_call.1} parent=1 // loop_header_branch
      %21 = sbr.rel (%p19) target = $region8
    $region5: #{tpu_custom_call.1} parent=1 // loop_body
      %s23 = ssub.s32 %s18, 1
      %s24 = ssub.s32 %s18, 2
      %s25 = sadd.s32 %s18, 1
      %s26 = ssub.s32 %s18, %s25
      %p27 = scmp.eq.s32.totalorder %s26, 0
      %s29 = sadd.s32 %s28, 1
      %s30 = scalar_select %p27, %s28, %s29
      %p33 = pneg %p27
      %p34 = scmp.eq.s32.totalorder %s18, 1
      %p35 = por %p33, %p34
      %p36 = scmp.ne.s32.totalorder %s28, %s31
      %p37 = scmp.eq.s32.totalorder %s18, 0
      %p38 = por %p36, %p37
      %p39 = scmp.ne.s32.totalorder %s28, %s31
      %p40 = scmp.eq.s32.totalorder %s23, 1
      %p41 = por %p39, %p40
      %p42 = scmp.ne.s32.totalorder %s31, %s32
      %p43 = scmp.eq.s32.totalorder %s23, 0
      %p44 = por %p42, %p43
      %p45 = scmp.ne.s32.totalorder %s31, %s32
      %p46 = scmp.eq.s32.totalorder %s24, 1
      %p47 = por %p45, %p46
      %p49 = scmp.ne.s32.totalorder %s32, %s48
      %p50 = scmp.eq.s32.totalorder %s24, 0
      %p51 = por %p49, %p50
      %s53 = sadd.s32 %s52, 1
      %p56 = scmp.eq.s32.totalorder %s18, 1
      %p57 = scmp.ne.s32.totalorder %s52, %s54
      %p58 = scmp.eq.s32.totalorder %s18, 0
      %p59 = por %p57, %p58
      %p60 = scmp.ne.s32.totalorder %s52, %s54
      %p61 = scmp.eq.s32.totalorder %s23, 1
      %p62 = por %p60, %p61
      %p63 = scmp.ne.s32.totalorder %s54, %s55
      %p64 = scmp.eq.s32.totalorder %s23, 0
      %p65 = por %p63, %p64
      %p66 = scmp.ne.s32.totalorder %s54, %s55
      %p67 = scmp.eq.s32.totalorder %s24, 1
      %p68 = por %p66, %p67
      %p70 = scmp.ne.s32.totalorder %s55, %s69
      %p71 = scmp.eq.s32.totalorder %s24, 0
      %p72 = por %p70, %p71
      %s74 = sadd.s32 %s73, 1
      %p77 = scmp.eq.s32.totalorder %s18, 1
      %p78 = scmp.ne.s32.totalorder %s73, %s75
      %p79 = scmp.eq.s32.totalorder %s18, 0
      %p80 = por %p78, %p79
      %p81 = scmp.ne.s32.totalorder %s73, %s75
      %p82 = scmp.eq.s32.totalorder %s23, 1
      %p83 = por %p81, %p82
      %p84 = scmp.ne.s32.totalorder %s75, %s76
      %p85 = scmp.eq.s32.totalorder %s23, 0
      %p86 = por %p84, %p85
      %p87 = scmp.ne.s32.totalorder %s75, %s76
      %p88 = scmp.eq.s32.totalorder %s24, 1
      %p89 = por %p87, %p88
      %p91 = scmp.ne.s32.totalorder %s76, %s90
      %p92 = scmp.eq.s32.totalorder %s24, 0
      %p93 = por %p91, %p92
      %s95 = sadd.s32 %s94, 1
      %p98 = scmp.eq.s32.totalorder %s18, 1
      %p99 = scmp.ne.s32.totalorder %s94, %s96
      %p100 = scmp.eq.s32.totalorder %s18, 0
      %p101 = por %p99, %p100
      %p102 = scmp.ne.s32.totalorder %s94, %s96
      %p103 = scmp.eq.s32.totalorder %s23, 1
      %p104 = por %p102, %p103
      %p105 = scmp.ne.s32.totalorder %s96, %s97
      %p106 = scmp.eq.s32.totalorder %s23, 0
      %p107 = por %p105, %p106
      %p108 = scmp.ne.s32.totalorder %s96, %s97
      %p109 = scmp.eq.s32.totalorder %s24, 1
      %p110 = por %p108, %p109
      %p112 = scmp.ne.s32.totalorder %s97, %s111
      %p113 = scmp.eq.s32.totalorder %s24, 0
      %p114 = por %p112, %p113
      %s116 = sadd.s32 %s115, 1
      %p119 = scmp.eq.s32.totalorder %s18, 1
      %p120 = scmp.ne.s32.totalorder %s115, %s117
      %p121 = scmp.eq.s32.totalorder %s18, 0
      %p122 = por %p120, %p121
      %p123 = scmp.ne.s32.totalorder %s115, %s117
      %p124 = scmp.eq.s32.totalorder %s23, 1
      %p125 = por %p123, %p124
      %p126 = scmp.ne.s32.totalorder %s117, %s118
      %p127 = scmp.eq.s32.totalorder %s23, 0
      %p128 = por %p126, %p127
      %p129 = scmp.ne.s32.totalorder %s117, %s118
      %p130 = scmp.eq.s32.totalorder %s24, 1
      %p131 = por %p129, %p130
      %p133 = scmp.ne.s32.totalorder %s118, %s132
      %p134 = scmp.eq.s32.totalorder %s24, 0
      %p135 = por %p133, %p134
      %s137 = sadd.s32 %s136, 1
      %p140 = scmp.eq.s32.totalorder %s18, 1
      %p141 = scmp.ne.s32.totalorder %s136, %s138
      %p142 = scmp.eq.s32.totalorder %s18, 0
      %p143 = por %p141, %p142
      %p144 = scmp.ne.s32.totalorder %s136, %s138
      %p145 = scmp.eq.s32.totalorder %s23, 1
      %p146 = por %p144, %p145
      %p147 = scmp.ne.s32.totalorder %s138, %s139
      %p148 = scmp.eq.s32.totalorder %s23, 0
      %p149 = por %p147, %p148
      %p150 = scmp.ne.s32.totalorder %s138, %s139
      %p151 = scmp.eq.s32.totalorder %s24, 1
      %p152 = por %p150, %p151
      %p154 = scmp.ne.s32.totalorder %s139, %s153
      %p155 = scmp.eq.s32.totalorder %s24, 0
      %p156 = por %p154, %p155
      %s158 = sadd.s32 %s157, 1
      %p161 = scmp.eq.s32.totalorder %s18, 1
      %p162 = scmp.ne.s32.totalorder %s157, %s159
      %p163 = scmp.eq.s32.totalorder %s18, 0
      %p164 = por %p162, %p163
      %p165 = scmp.ne.s32.totalorder %s157, %s159
      %p166 = scmp.eq.s32.totalorder %s23, 1
      %p167 = por %p165, %p166
      %p168 = scmp.ne.s32.totalorder %s159, %s160
      %p169 = scmp.eq.s32.totalorder %s23, 0
      %p170 = por %p168, %p169
      %p171 = scmp.ne.s32.totalorder %s159, %s160
      %p172 = scmp.eq.s32.totalorder %s24, 1
      %p173 = por %p171, %p172
      %p175 = scmp.ne.s32.totalorder %s160, %s174
      %p176 = scmp.eq.s32.totalorder %s24, 0
      %p177 = por %p175, %p176
      %s179 = sadd.s32 %s178, 1
      %p182 = scmp.eq.s32.totalorder %s18, 1
      %p183 = scmp.ne.s32.totalorder %s178, %s180
      %p184 = scmp.eq.s32.totalorder %s18, 0
      %p185 = por %p183, %p184
      %p186 = scmp.ne.s32.totalorder %s178, %s180
      %p187 = scmp.eq.s32.totalorder %s23, 1
      %p188 = por %p186, %p187
      %p189 = scmp.ne.s32.totalorder %s180, %s181
      %p190 = scmp.eq.s32.totalorder %s23, 0
      %p191 = por %p189, %p190
      %p192 = scmp.ne.s32.totalorder %s180, %s181
      %p193 = scmp.eq.s32.totalorder %s24, 1
      %p194 = por %p192, %p193
      %p196 = scmp.ne.s32.totalorder %s181, %s195
      %p197 = scmp.eq.s32.totalorder %s24, 0
      %p198 = por %p196, %p197
      %s199 = ssub.s32 %s18, %s25
      %p200 = scmp.eq.s32.totalorder %s199, 0
      %s202 = sadd.s32 %s201, 1
      %s203 = scalar_select %p200, %s201, %s202
      %p206 = pneg %p200
      %p207 = scmp.eq.s32.totalorder %s18, 1
      %p208 = por %p206, %p207
      %p209 = scmp.ne.s32.totalorder %s201, %s204
      %p210 = scmp.eq.s32.totalorder %s18, 0
      %p211 = por %p209, %p210
      %p212 = scmp.ne.s32.totalorder %s201, %s204
      %p213 = scmp.eq.s32.totalorder %s23, 1
      %p214 = por %p212, %p213
      %p215 = scmp.ne.s32.totalorder %s204, %s205
      %p216 = scmp.eq.s32.totalorder %s23, 0
      %p217 = por %p215, %p216
      %p218 = scmp.ne.s32.totalorder %s204, %s205
      %p219 = scmp.eq.s32.totalorder %s24, 1
      %p220 = por %p218, %p219
      %p222 = scmp.ne.s32.totalorder %s205, %s221
      %p223 = scmp.eq.s32.totalorder %s24, 0
      %p224 = por %p222, %p223
      %p225 = scmp.le.s32.totalorder 1, %s18
      %p226 = scmp.lt.s32.totalorder %s18, 3
      %p227 = pnand %p225, %p226
      %p228 = pneg %p227
      // Predicated region
      $region9: #{tpu_custom_call.1} parent=5 // pred_check
        _
      $region10: #{tpu_custom_call.1} parent=5 // pred_check_branch
        %230 = sbr.rel (%p227) target = $region12
      $region11: #{tpu_custom_call.1} parent=5 // pred_region
        %s231 = ssub.s32 %s18, 1
        // Predicated region
        $region13: #{tpu_custom_call.1} parent=11 // pred_check
          %p232 = pneg %p65
        $region14: #{tpu_custom_call.1} parent=11 // pred_check_branch
          %234 = sbr.rel (%p232) target = $region16
        $region15: #{tpu_custom_call.1} parent=11 // pred_region
          %s236 = ssub.s32 128, 128
          %237 = vsyncadd [#allocation3], %s236
          %s239 = sshll.u32 [#allocation2], 4
          %s240 = int_to_ptr.vmem [resolvable:$true] %s239
          %242 = dma.hbm_to_vmem [thread:$0]  %s1, 128, %s240, [#allocation3]
        $region16: #{tpu_custom_call.1} parent=11 // pred_fallthru
          _
        // Predicated region
        $region17: #{tpu_custom_call.1} parent=11 // pred_check
          %p243 = pneg %p86
        $region18: #{tpu_custom_call.1} parent=11 // pred_check_branch
          %245 = sbr.rel (%p243) target = $region20
        $region19: #{tpu_custom_call.1} parent=11 // pred_region
          _
        $region20: #{tpu_custom_call.1} parent=11 // pred_fallthru
          _
        // Predicated region
        $region21: #{tpu_custom_call.1} parent=11 // pred_check
          %p246 = pneg %p107
        $region22: #{tpu_custom_call.1} parent=11 // pred_check_branch
          %248 = sbr.rel (%p246) target = $region24
        $region23: #{tpu_custom_call.1} parent=11 // pred_region
          _
        $region24: #{tpu_custom_call.1} parent=11 // pred_fallthru
          _
        // Predicated region
        $region25: #{tpu_custom_call.1} parent=11 // pred_check
          %p249 = pneg %p128
        $region26: #{tpu_custom_call.1} parent=11 // pred_check_branch
          %251 = sbr.rel (%p249) target = $region28
        $region27: #{tpu_custom_call.1} parent=11 // pred_region
          _
        $region28: #{tpu_custom_call.1} parent=11 // pred_fallthru
          _
        // Predicated region
        $region29: #{tpu_custom_call.1} parent=11 // pred_check
          %p252 = pneg %p149
        $region30: #{tpu_custom_call.1} parent=11 // pred_check_branch
          %254 = sbr.rel (%p252) target = $region32
        $region31: #{tpu_custom_call.1} parent=11 // pred_region
          _
        $region32: #{tpu_custom_call.1} parent=11 // pred_fallthru
          _
        // Predicated region
        $region33: #{tpu_custom_call.1} parent=11 // pred_check
          %p255 = pneg %p170
        $region34: #{tpu_custom_call.1} parent=11 // pred_check_branch
          %257 = sbr.rel (%p255) target = $region36
        $region35: #{tpu_custom_call.1} parent=11 // pred_region
          _
        $region36: #{tpu_custom_call.1} parent=11 // pred_fallthru
          _
        // Predicated region
        $region37: #{tpu_custom_call.1} parent=11 // pred_check
          %p258 = pneg %p191
        $region38: #{tpu_custom_call.1} parent=11 // pred_check_branch
          %260 = sbr.rel (%p258) target = $region40
        $region39: #{tpu_custom_call.1} parent=11 // pred_region
          _
        $region40: #{tpu_custom_call.1} parent=11 // pred_fallthru
          _
      $region12: #{tpu_custom_call.1} parent=5 // pred_fallthru
        _
      %p261 = scmp.lt.s32.totalorder %s18, 2
      // Predicated region
      $region41: #{tpu_custom_call.1} parent=5 // pred_check
        %p262 = pneg %p261
      $region42: #{tpu_custom_call.1} parent=5 // pred_check_branch
        %264 = sbr.rel (%p262) target = $region44
      $region43: #{tpu_custom_call.1} parent=5 // pred_region
        // Predicated region
        $region45: #{tpu_custom_call.1} parent=43 // pred_check
          %p265 = pneg %p38
        $region46: #{tpu_custom_call.1} parent=43 // pred_check_branch
          %267 = sbr.rel (%p265) target = $region48
        $region47: #{tpu_custom_call.1} parent=43 // pred_region
          %p268 = scmp.lt.s32.totalorder %s18, 1
          %s269 = scalar_select %p268, %s18, 1
          %s270 = smul.addr %s269, 2
          %s271 = smul.addr %s270, 8
          %s272 = scalar_lea.vmem %s0, %s271
        $region48: #{tpu_custom_call.1} parent=43 // pred_fallthru
          _
      $region44: #{tpu_custom_call.1} parent=5 // pred_fallthru
        _
      %p273 = scmp.le.s32.totalorder 1, %s18
      %p274 = scmp.lt.s32.totalorder %s18, 3
      %p275 = pnand %p273, %p274
      %p276 = pneg %p275
      // Predicated region
      $region49: #{tpu_custom_call.1} parent=5 // pred_check
        _
      $region50: #{tpu_custom_call.1} parent=5 // pred_check_branch
        %278 = sbr.rel (%p275) target = $region52
      $region51: #{tpu_custom_call.1} parent=5 // pred_region
        %s279 = ssub.s32 %s18, 1
        // Predicated region
        $region53: #{tpu_custom_call.1} parent=51 // pred_check
          %p280 = pneg %p65
        $region54: #{tpu_custom_call.1} parent=51 // pred_check_branch
          %282 = sbr.rel (%p280) target = $region56
        $region55: #{tpu_custom_call.1} parent=51 // pred_region
          %283 = dma.done [#allocation3], 128
        $region56: #{tpu_custom_call.1} parent=51 // pred_fallthru
          _
        %p284 = scmp.lt.s32.totalorder %s23, 1
        %s285 = scalar_select %p284, %s23, 1
        %s286 = smul.addr %s285, 2
        %s287 = smul.addr %s286, 8
        %s288 = scalar_lea.vmem %s0, %s287
        %p289 = pneg %p44
        %p290 = pneg %p41
        %p291 = pneg %p65
        %p292 = pneg %p62
        %p293 = pneg %p86
        %p294 = pneg %p83
        %p295 = pneg %p107
        %p296 = pneg %p104
        %p297 = pneg %p128
        %p298 = pneg %p125
        %p299 = pneg %p149
        %p300 = pneg %p146
        %p301 = pneg %p170
        %p302 = pneg %p167
        %p303 = pneg %p191
        %p304 = pneg %p188
        %p305 = pneg %p217
        %p306 = pneg %p214
        %s307 = sand.u32 %s204, 1
        %s308 = scalar_lea.sflag [#allocation4], %s307
        %s309 = sand.u32 %s204, 1
        %s310 = smul.addr %s309, 16
        %s311 = scalar_lea.vmem [#allocation5], %s310
        %p312 = scmp.lt.s32.totalorder %s23, 1
        %s313 = scalar_select %p312, %s23, 1
        %s314 = smul.addr %s313, 2
        %s315 = smul.addr %s314, 8
        %s316 = scalar_lea.vmem %s0, %s315
        %v317 = vld [vmem:[%s316] sm:$0xff]
        %v318 = vld [vmem:[%s316 + $0x8] sm:$0xff]
        %321 = vrot.lane.b32.xlu0 %v317, 17
        %v322 = vpop.permute.xlu0 %321
        %323 = vrot.lane.b32.xlu0 %v318, 17
        %v324 = vpop.permute.xlu0 %323
        %vm325 = vcmask 138240
        %v326 = vsel %vm325, %v322, %v324
        %v330 = vsel %vm325, 0.0, %v322
        %v331 = vsel %vm325, %v324, 0.0
        %v332 = vld [vmem:[%s7] ss:$4 sm:$0x3]
        %v334 = vlaneseq
        %v335 = vshrl.u32 %v334, 7
        %v336 = vsub.s32 0, %v335
        %v337 = vrot.slane %v332, %v336
        %v338 = vlaneseq
        %v339 = vshrl.u32 %v338, 7
        %v340 = vsub.s32 1, %v339
        %v341 = vrot.slane %v332, %v340
        %v344 = vmul.f32 %v330, %v337
        %v345 = vmul.f32 %v326, %v341
        %s346 = scalar_lea.vmem %s7, 1
        %v347 = vld [vmem:[%s346] ss:$4 sm:$0x3]
        %v349 = vlaneseq
        %v350 = vshrl.u32 %v349, 7
        %v351 = vsub.s32 0, %v350
        %v352 = vrot.slane %v347, %v351
        %v353 = vlaneseq
        %v354 = vshrl.u32 %v353, 7
        %v355 = vsub.s32 1, %v354
        %v356 = vrot.slane %v347, %v355
        %357 = vrot.lane.b32.xlu0 %v352, 1
        %v358 = vpop.permute.xlu0 %357
        %359 = vrot.lane.b32.xlu0 %v356, 1
        %v360 = vpop.permute.xlu0 %359
        %vm361 = vcmask 7168
        %v362 = vsel %vm361, %v358, %v360
        %v366 = vmul.f32 %v330, %v358
        %v367 = vmul.f32 %v326, %v362
        %v368 = vmul.f32 %v331, %v360
        %s369 = scalar_lea.vmem %s7, 2
        %v370 = vld [vmem:[%s369] ss:$4 sm:$0x3]
        %v372 = vlaneseq
        %v373 = vshrl.u32 %v372, 7
        %v374 = vsub.s32 0, %v373
        %v375 = vrot.slane %v370, %v374
        %v376 = vlaneseq
        %v377 = vshrl.u32 %v376, 7
        %v378 = vsub.s32 1, %v377
        %v379 = vrot.slane %v370, %v378
        %380 = vrot.lane.b32.xlu0 %v375, 2
        %v381 = vpop.permute.xlu0 %380
        %382 = vrot.lane.b32.xlu0 %v379, 2
        %v383 = vpop.permute.xlu0 %382
        %vm384 = vcmask 15360
        %v385 = vsel %vm384, %v381, %v383
        %v389 = vmul.f32 %v330, %v381
        %v390 = vmul.f32 %v326, %v385
        %v391 = vmul.f32 %v331, %v383
        %392 = vrot.lane.b32.xlu0 %v337, 16
        %v393 = vpop.permute.xlu0 %392
        %394 = vrot.lane.b32.xlu0 %v341, 16
        %v395 = vpop.permute.xlu0 %394
        %vm396 = vcmask 130048
        %v397 = vsel %vm396, %v393, %v395
        %v401 = vmul.f32 %v330, %v393
        %v402 = vmul.f32 %v326, %v397
        %v403 = vmul.f32 %v331, %v395
        %404 = vrot.lane.b32.xlu0 %v352, 17
        %v405 = vpop.permute.xlu0 %404
        %406 = vrot.lane.b32.xlu0 %v356, 17
        %v407 = vpop.permute.xlu0 %406
        %v408 = vsel %vm325, %v405, %v407
        %v412 = vmul.f32 %v330, %v405
        %v413 = vmul.f32 %v326, %v408
        %v414 = vmul.f32 %v331, %v407
        %415 = vrot.lane.b32.xlu0 %v375, 18
        %v416 = vpop.permute.xlu0 %415
        %417 = vrot.lane.b32.xlu0 %v379, 18
        %v418 = vpop.permute.xlu0 %417
        %vm419 = vcmask 146432
        %v420 = vsel %vm419, %v416, %v418
        %v424 = vmul.f32 %v330, %v416
        %v425 = vmul.f32 %v326, %v420
        %v426 = vmul.f32 %v331, %v418
        %427 = vrot.lane.b32.xlu0 %v337, 32
        %v428 = vpop.permute.xlu0 %427
        %429 = vrot.lane.b32.xlu0 %v341, 32
        %v430 = vpop.permute.xlu0 %429
        %vm431 = vcmask 261120
        %v432 = vsel %vm431, %v428, %v430
        %v436 = vmul.f32 %v330, %v428
        %v437 = vmul.f32 %v326, %v432
        %v438 = vmul.f32 %v331, %v430
        %439 = vrot.lane.b32.xlu0 %v352, 33
        %v440 = vpop.permute.xlu0 %439
        %441 = vrot.lane.b32.xlu0 %v356, 33
        %v442 = vpop.permute.xlu0 %441
        %vm443 = vcmask 269312
        %v444 = vsel %vm443, %v440, %v442
        %v448 = vmul.f32 %v330, %v440
        %v449 = vmul.f32 %v326, %v444
        %v450 = vmul.f32 %v331, %v442
        %451 = vrot.lane.b32.xlu0 %v375, 34
        %v452 = vpop.permute.xlu0 %451
        %453 = vrot.lane.b32.xlu0 %v379, 34
        %v454 = vpop.permute.xlu0 %453
        %vm455 = vcmask 277504
        %v456 = vsel %vm455, %v452, %v454
        %v460 = vmul.f32 %v330, %v452
        %v461 = vmul.f32 %v326, %v456
        %v462 = vmul.f32 %v331, %v454
        %466 = vrot.lane.b32.xlu0 %v366, 127
        %v467 = vpop.permute.xlu0 %466
        %468 = vrot.lane.b32.xlu0 %v367, 127
        %v469 = vpop.permute.xlu0 %468
        %470 = vrot.lane.b32.xlu0 %v368, 127
        %v471 = vpop.permute.xlu0 %470
        %vm472 = vcmask 1039360
        %v473 = vsel %vm472, %v467, %v469
        %v474 = vsel %vm472, %v469, %v471
        %480 = vrot.lane.b32.xlu0 %v389, 126
        %v481 = vpop.permute.xlu0 %480
        %482 = vrot.lane.b32.xlu0 %v390, 126
        %v483 = vpop.permute.xlu0 %482
        %484 = vrot.lane.b32.xlu0 %v391, 126
        %v485 = vpop.permute.xlu0 %484
        %vm486 = vcmask 1031168
        %v487 = vsel %vm486, %v481, %v483
        %v488 = vsel %vm486, %v483, %v485
        %494 = vrot.lane.b32.xlu0 %v401, 112
        %v495 = vpop.permute.xlu0 %494
        %496 = vrot.lane.b32.xlu0 %v402, 112
        %v497 = vpop.permute.xlu0 %496
        %498 = vrot.lane.b32.xlu0 %v403, 112
        %v499 = vpop.permute.xlu0 %498
        %vm500 = vcmask 916480
        %v501 = vsel %vm500, %v495, %v497
        %v502 = vsel %vm500, %v497, %v499
        %508 = vrot.lane.b32.xlu0 %v412, 111
        %v509 = vpop.permute.xlu0 %508
        %510 = vrot.lane.b32.xlu0 %v413, 111
        %v511 = vpop.permute.xlu0 %510
        %512 = vrot.lane.b32.xlu0 %v414, 111
        %v513 = vpop.permute.xlu0 %512
        %vm514 = vcmask 908288
        %v515 = vsel %vm514, %v509, %v511
        %v516 = vsel %vm514, %v511, %v513
        %522 = vrot.lane.b32.xlu0 %v424, 110
        %v523 = vpop.permute.xlu0 %522
        %524 = vrot.lane.b32.xlu0 %v425, 110
        %v525 = vpop.permute.xlu0 %524
        %526 = vrot.lane.b32.xlu0 %v426, 110
        %v527 = vpop.permute.xlu0 %526
        %vm528 = vcmask 900096
        %v529 = vsel %vm528, %v523, %v525
        %v530 = vsel %vm528, %v525, %v527
        %536 = vrot.lane.b32.xlu0 %v436, 96
        %v537 = vpop.permute.xlu0 %536
        %538 = vrot.lane.b32.xlu0 %v437, 96
        %v539 = vpop.permute.xlu0 %538
        %540 = vrot.lane.b32.xlu0 %v438, 96
        %v541 = vpop.permute.xlu0 %540
        %vm542 = vcmask 785408
        %v543 = vsel %vm542, %v537, %v539
        %v544 = vsel %vm542, %v539, %v541
        %550 = vrot.lane.b32.xlu0 %v448, 95
        %v551 = vpop.permute.xlu0 %550
        %552 = vrot.lane.b32.xlu0 %v449, 95
        %v553 = vpop.permute.xlu0 %552
        %554 = vrot.lane.b32.xlu0 %v450, 95
        %v555 = vpop.permute.xlu0 %554
        %vm556 = vcmask 777216
        %v557 = vsel %vm556, %v551, %v553
        %v558 = vsel %vm556, %v553, %v555
        %564 = vrot.lane.b32.xlu0 %v460, 94
        %v565 = vpop.permute.xlu0 %564
        %566 = vrot.lane.b32.xlu0 %v461, 94
        %v567 = vpop.permute.xlu0 %566
        %568 = vrot.lane.b32.xlu0 %v462, 94
        %v569 = vpop.permute.xlu0 %568
        %vm570 = vcmask 769024
        %v571 = vsel %vm570, %v565, %v567
        %v572 = vsel %vm570, %v567, %v569
        %v575 = vld [vmem:[#allocation2] sm:$0xff]
        %vm576 = vcmask 588800
        %v578 = vsel %vm576, %v575, 0
        %580 = vmatprep.subr.mxu0 %v345
        %581 = vmatpush1.msra.mxu0 %v344
        %582 = vmatprep.subr.mxu0 %v474
        %583 = vmatpush1.msra.mxu0 %v473
        %584 = vmatprep.subr.mxu0 %v488
        %585 = vmatpush1.msra.mxu0 %v487
        %586 = vmatprep.subr.mxu0 %v502
        %587 = vmatpush1.msra.mxu0 %v501
        %588 = vmatprep.subr.mxu0 %v516
        %589 = vmatpush1.msra.mxu0 %v515
        %590 = vmatprep.subr.mxu0 %v530
        %591 = vmatpush1.msra.mxu0 %v529
        %592 = vmatprep.subr.mxu0 %v544
        %593 = vmatpush1.msra.mxu0 %v543
        %594 = vmatprep.subr.mxu0 %v558
        %595 = vmatpush1.msra.mxu0 %v557
        %596 = vmatprep.subr.mxu0 %v572
        %597 = vmatpush1.msra.mxu0 %v571
        %598 = vmatprep.subr.mxu0 0.0
        %599 = vmatpush1.msra.mxu0 0.0
        %600 = vmatprep.subr.mxu0 0.0
        %601 = vmatpush1.msra.mxu0 0.0
        %602 = vmatprep.subr.mxu0 0.0
        %603 = vmatpush1.msra.mxu0 0.0
        %604 = vmatprep.subr.mxu0 0.0
        %605 = vmatpush1.msra.mxu0 0.0
        %606 = vmatprep.subr.mxu0 0.0
        %607 = vmatpush1.msra.mxu0 0.0
        %608 = vmatprep.subr.mxu0 0.0
        %609 = vmatpush1.msra.mxu0 0.0
        %610 = vmatprep.subr.mxu0 0.0
        %611 = vmatpush1.msra.mxu0 0.0
        %612 = vmatprep.subr.mxu0 0.0
        %613 = vmatpush1.msra.mxu0 0.0
        %614 = vmatprep.subr.mxu0 0.0
        %615 = vmatpush1.msra.mxu0 0.0
        %616 = vmatprep.subr.mxu0 0.0
        %617 = vmatpush1.msra.mxu0 0.0
        %618 = vmatprep.subr.mxu0 0.0
        %619 = vmatpush1.msra.mxu0 0.0
        %620 = vmatprep.subr.mxu0 0.0
        %621 = vmatpush1.msra.mxu0 0.0
        %622 = vmatprep.subr.mxu0 0.0
        %623 = vmatpush1.msra.mxu0 0.0
        %624 = vmatprep.subr.mxu0 0.0
        %625 = vmatpush1.msra.mxu0 0.0
        %626 = vmatprep.subr.mxu0 0.0
        %627 = vmatpush1.msra.mxu0 0.0
        %628 = vmatprep.subr.mxu0 0.0
        %629 = vmatpush1.msra.mxu0 0.0
        %630 = vmatprep.subr.mxu0 0.0
        %631 = vmatpush1.msra.mxu0 0.0
        %632 = vmatprep.subr.mxu0 0.0
        %633 = vmatpush1.msra.mxu0 0.0
        %634 = vmatprep.subr.mxu0 0.0
        %635 = vmatpush1.msra.mxu0 0.0
        %636 = vmatprep.subr.mxu0 0.0
        %637 = vmatpush1.msra.mxu0 0.0
        %638 = vmatprep.subr.mxu0 0.0
        %639 = vmatpush1.msra.mxu0 0.0
        %640 = vmatprep.subr.mxu0 0.0
        %641 = vmatpush1.msra.mxu0 0.0
        %642 = vmatprep.subr.mxu0 0.0
        %643 = vmatpush1.msra.mxu0 0.0
        %644 = vmatprep.mubr.f32.mxu0 0.0
        %645 = vmatmul.mubr.f32.gmra.mrb[0].mxu0 %v578
        %v646 = vpop.f32.mrb[0].mxu0
        %v647 = vadd.f32 0.0, %v646
        %v648 = vpop.f32.mrb[0].mxu0
        %v649 = vadd.f32 0.0, %v648
        %650 = vdwg.mxu0
        %v651 = vld [vmem:[%s3] sm:$0xff]
        %653 = vset.pattern.permute.xlu0 0
        %654 = vperm.xlu0 %653, %v651
        %v655 = vpop.permute.xlu0 %654
        %v657 = vmul.f32 %v647, %v655
        %v658 = vmul.f32 %v649, %v655
        %v659 = vld [vmem:[%s4] sm:$0xff]
        %661 = vset.pattern.permute.xlu0 0
        %662 = vperm.xlu0 %661, %v659
        %v663 = vpop.permute.xlu0 %662
        %v665 = vadd.f32 %v657, %v663
        %v666 = vadd.f32 %v658, %v663
        %v667 = vmax.f32 %v665, 0.0
        %v668 = vmax.f32 %v666, 0.0
        %671 = vrot.lane.b32.xlu0 %v667, 17
        %v672 = vpop.permute.xlu0 %671
        %673 = vrot.lane.b32.xlu0 %v668, 17
        %v674 = vpop.permute.xlu0 %673
        %v675 = vsel %vm325, %v672, %v674
        %v679 = vsel %vm325, 0.0, %v672
        %v680 = vsel %vm325, %v674, 0.0
        %v681 = vmul.f32 %v679, %v337
        %v682 = vmul.f32 %v675, %v341
        %v683 = vmul.f32 %v679, %v358
        %v684 = vmul.f32 %v675, %v362
        %v685 = vmul.f32 %v680, %v360
        %v686 = vmul.f32 %v679, %v381
        %v687 = vmul.f32 %v675, %v385
        %v688 = vmul.f32 %v680, %v383
        %v689 = vmul.f32 %v679, %v393
        %v690 = vmul.f32 %v675, %v397
        %v691 = vmul.f32 %v680, %v395
        %v692 = vmul.f32 %v679, %v405
        %v693 = vmul.f32 %v675, %v408
        %v694 = vmul.f32 %v680, %v407
        %v695 = vmul.f32 %v679, %v416
        %v696 = vmul.f32 %v675, %v420
        %v697 = vmul.f32 %v680, %v418
        %v698 = vmul.f32 %v679, %v428
        %v699 = vmul.f32 %v675, %v432
        %v700 = vmul.f32 %v680, %v430
        %v701 = vmul.f32 %v679, %v440
        %v702 = vmul.f32 %v675, %v444
        %v703 = vmul.f32 %v680, %v442
        %v704 = vmul.f32 %v679, %v452
        %v705 = vmul.f32 %v675, %v456
        %v706 = vmul.f32 %v680, %v454
        %710 = vrot.lane.b32.xlu0 %v683, 127
        %v711 = vpop.permute.xlu0 %710
        %712 = vrot.lane.b32.xlu0 %v684, 127
        %v713 = vpop.permute.xlu0 %712
        %714 = vrot.lane.b32.xlu0 %v685, 127
        %v715 = vpop.permute.xlu0 %714
        %v716 = vsel %vm472, %v711, %v713
        %v717 = vsel %vm472, %v713, %v715
        %723 = vrot.lane.b32.xlu0 %v686, 126
        %v724 = vpop.permute.xlu0 %723
        %725 = vrot.lane.b32.xlu0 %v687, 126
        %v726 = vpop.permute.xlu0 %725
        %727 = vrot.lane.b32.xlu0 %v688, 126
        %v728 = vpop.permute.xlu0 %727
        %v729 = vsel %vm486, %v724, %v726
        %v730 = vsel %vm486, %v726, %v728
        %736 = vrot.lane.b32.xlu0 %v689, 112
        %v737 = vpop.permute.xlu0 %736
        %738 = vrot.lane.b32.xlu0 %v690, 112
        %v739 = vpop.permute.xlu0 %738
        %740 = vrot.lane.b32.xlu0 %v691, 112
        %v741 = vpop.permute.xlu0 %740
        %v742 = vsel %vm500, %v737, %v739
        %v743 = vsel %vm500, %v739, %v741
        %749 = vrot.lane.b32.xlu0 %v692, 111
        %v750 = vpop.permute.xlu0 %749
        %751 = vrot.lane.b32.xlu0 %v693, 111
        %v752 = vpop.permute.xlu0 %751
        %753 = vrot.lane.b32.xlu0 %v694, 111
        %v754 = vpop.permute.xlu0 %753
        %v755 = vsel %vm514, %v750, %v752
        %v756 = vsel %vm514, %v752, %v754
        %762 = vrot.lane.b32.xlu0 %v695, 110
        %v763 = vpop.permute.xlu0 %762
        %764 = vrot.lane.b32.xlu0 %v696, 110
        %v765 = vpop.permute.xlu0 %764
        %766 = vrot.lane.b32.xlu0 %v697, 110
        %v767 = vpop.permute.xlu0 %766
        %v768 = vsel %vm528, %v763, %v765
        %v769 = vsel %vm528, %v765, %v767
        %775 = vrot.lane.b32.xlu0 %v698, 96
        %v776 = vpop.permute.xlu0 %775
        %777 = vrot.lane.b32.xlu0 %v699, 96
        %v778 = vpop.permute.xlu0 %777
        %779 = vrot.lane.b32.xlu0 %v700, 96
        %v780 = vpop.permute.xlu0 %779
        %v781 = vsel %vm542, %v776, %v778
        %v782 = vsel %vm542, %v778, %v780
        %788 = vrot.lane.b32.xlu0 %v701, 95
        %v789 = vpop.permute.xlu0 %788
        %790 = vrot.lane.b32.xlu0 %v702, 95
        %v791 = vpop.permute.xlu0 %790
        %792 = vrot.lane.b32.xlu0 %v703, 95
        %v793 = vpop.permute.xlu0 %792
        %v794 = vsel %vm556, %v789, %v791
        %v795 = vsel %vm556, %v791, %v793
        %801 = vrot.lane.b32.xlu0 %v704, 94
        %v802 = vpop.permute.xlu0 %801
        %803 = vrot.lane.b32.xlu0 %v705, 94
        %v804 = vpop.permute.xlu0 %803
        %805 = vrot.lane.b32.xlu0 %v706, 94
        %v806 = vpop.permute.xlu0 %805
        %v807 = vsel %vm570, %v802, %v804
        %v808 = vsel %vm570, %v804, %v806
        %v811 = vld [vmem:[%s2] sm:$0xff]
        %v813 = vsel %vm576, %v811, 0
        %815 = vmatprep.subr.mxu0 %v682
        %816 = vmatpush1.msra.mxu0 %v681
        %817 = vmatprep.subr.mxu0 %v717
        %818 = vmatpush1.msra.mxu0 %v716
        %819 = vmatprep.subr.mxu0 %v730
        %820 = vmatpush1.msra.mxu0 %v729
        %821 = vmatprep.subr.mxu0 %v743
        %822 = vmatpush1.msra.mxu0 %v742
        %823 = vmatprep.subr.mxu0 %v756
        %824 = vmatpush1.msra.mxu0 %v755
        %825 = vmatprep.subr.mxu0 %v769
        %826 = vmatpush1.msra.mxu0 %v768
        %827 = vmatprep.subr.mxu0 %v782
        %828 = vmatpush1.msra.mxu0 %v781
        %829 = vmatprep.subr.mxu0 %v795
        %830 = vmatpush1.msra.mxu0 %v794
        %831 = vmatprep.subr.mxu0 %v808
        %832 = vmatpush1.msra.mxu0 %v807
        %833 = vmatprep.subr.mxu0 0.0
        %834 = vmatpush1.msra.mxu0 0.0
        %835 = vmatprep.subr.mxu0 0.0
        %836 = vmatpush1.msra.mxu0 0.0
        %837 = vmatprep.subr.mxu0 0.0
        %838 = vmatpush1.msra.mxu0 0.0
        %839 = vmatprep.subr.mxu0 0.0
        %840 = vmatpush1.msra.mxu0 0.0
        %841 = vmatprep.subr.mxu0 0.0
        %842 = vmatpush1.msra.mxu0 0.0
        %843 = vmatprep.subr.mxu0 0.0
        %844 = vmatpush1.msra.mxu0 0.0
        %845 = vmatprep.subr.mxu0 0.0
        %846 = vmatpush1.msra.mxu0 0.0
        %847 = vmatprep.subr.mxu0 0.0
        %848 = vmatpush1.msra.mxu0 0.0
        %849 = vmatprep.subr.mxu0 0.0
        %850 = vmatpush1.msra.mxu0 0.0
        %851 = vmatprep.subr.mxu0 0.0
        %852 = vmatpush1.msra.mxu0 0.0
        %853 = vmatprep.subr.mxu0 0.0
        %854 = vmatpush1.msra.mxu0 0.0
        %855 = vmatprep.subr.mxu0 0.0
        %856 = vmatpush1.msra.mxu0 0.0
        %857 = vmatprep.subr.mxu0 0.0
        %858 = vmatpush1.msra.mxu0 0.0
        %859 = vmatprep.subr.mxu0 0.0
        %860 = vmatpush1.msra.mxu0 0.0
        %861 = vmatprep.subr.mxu0 0.0
        %862 = vmatpush1.msra.mxu0 0.0
        %863 = vmatprep.subr.mxu0 0.0
        %864 = vmatpush1.msra.mxu0 0.0
        %865 = vmatprep.subr.mxu0 0.0
        %866 = vmatpush1.msra.mxu0 0.0
        %867 = vmatprep.subr.mxu0 0.0
        %868 = vmatpush1.msra.mxu0 0.0
        %869 = vmatprep.subr.mxu0 0.0
        %870 = vmatpush1.msra.mxu0 0.0
        %871 = vmatprep.subr.mxu0 0.0
        %872 = vmatpush1.msra.mxu0 0.0
        %873 = vmatprep.subr.mxu0 0.0
        %874 = vmatpush1.msra.mxu0 0.0
        %875 = vmatprep.subr.mxu0 0.0
        %876 = vmatpush1.msra.mxu0 0.0
        %877 = vmatprep.subr.mxu0 0.0
        %878 = vmatpush1.msra.mxu0 0.0
        %879 = vmatprep.mubr.f32.mxu0 0.0
        %880 = vmatmul.mubr.f32.gmra.mrb[0].mxu0 %v813
        %v881 = vpop.f32.mrb[0].mxu0
        %v882 = vadd.f32 0.0, %v881
        %v883 = vpop.f32.mrb[0].mxu0
        %v884 = vadd.f32 0.0, %v883
        %885 = vdwg.mxu0
        %v886 = vld [vmem:[%s5] sm:$0xff]
        %888 = vset.pattern.permute.xlu0 0
        %889 = vperm.xlu0 %888, %v886
        %v890 = vpop.permute.xlu0 %889
        %v892 = vmul.f32 %v882, %v890
        %v893 = vmul.f32 %v884, %v890
        %v894 = vld [vmem:[%s6] sm:$0xff]
        %896 = vset.pattern.permute.xlu0 0
        %897 = vperm.xlu0 %896, %v894
        %v898 = vpop.permute.xlu0 %897
        %v900 = vadd.f32 %v892, %v898
        %v901 = vadd.f32 %v893, %v898
        %v902 = vadd.f32 %v900, %v317
        %v903 = vadd.f32 %v901, %v318
        %v904 = vmax.f32 %v902, 0.0
        %v905 = vmax.f32 %v903, 0.0
        %906 = vst [vmem:[%s311] sm:$0xff] %v904
        %907 = vst [vmem:[%s311 + $0x8] sm:$0xff] %v905
        %s908 = sand.u32 %s204, 1
        %s909 = scalar_lea.sflag [#allocation4], %s908
        %s910 = sand.u32 %s204, 1
        %s911 = smul.addr %s910, 16
        %s912 = scalar_lea.vmem [#allocation5], %s911
        // Predicated region
        $region57: #{tpu_custom_call.1} parent=51 // pred_check
          %p913 = pneg %p214
        $region58: #{tpu_custom_call.1} parent=51 // pred_check_branch
          %915 = sbr.rel (%p913) target = $region60
        $region59: #{tpu_custom_call.1} parent=51 // pred_region
          %s917 = ssub.s32 256, 256
          %918 = vsyncadd %s909, %s917
          %s919 = smul.addr %s23, 2
          %s920 = smul.addr %s919, 128
          %s921 = scalar_lea.hbm %s8, %s920
          %s923 = sshll.u32 %s912, 4
          %s924 = int_to_ptr.vmem [resolvable:$true] %s923
          %926 = dma.vmem_to_hbm [thread:$0]  %s924, 256, %s921, %s909
        $region60: #{tpu_custom_call.1} parent=51 // pred_fallthru
          _
      $region52: #{tpu_custom_call.1} parent=5 // pred_fallthru
        _
      %p927 = scmp.le.s32.totalorder 2, %s18
      // Predicated region
      $region61: #{tpu_custom_call.1} parent=5 // pred_check
        %p928 = pneg %p927
      $region62: #{tpu_custom_call.1} parent=5 // pred_check_branch
        %930 = sbr.rel (%p928) target = $region64
      $region63: #{tpu_custom_call.1} parent=5 // pred_region
        %s931 = ssub.s32 %s18, 2
        // Predicated region
        $region65: #{tpu_custom_call.1} parent=63 // pred_check
          %p932 = pneg %p220
        $region66: #{tpu_custom_call.1} parent=63 // pred_check_branch
          %934 = sbr.rel (%p932) target = $region68
        $region67: #{tpu_custom_call.1} parent=63 // pred_region
          %s935 = sand.u32 %s205, 1
          %s936 = scalar_lea.sflag [#allocation4], %s935
          %s937 = sand.u32 %s205, 1
          %s938 = smul.addr %s937, 16
          %s939 = scalar_lea.vmem [#allocation5], %s938
          %940 = dma.done %s936, 256
        $region68: #{tpu_custom_call.1} parent=63 // pred_fallthru
          _
      $region64: #{tpu_custom_call.1} parent=5 // pred_fallthru
        _
    $region6: #{tpu_custom_call.1} parent=1 // loop_footer
      %s22 = sadd.s32 1, %s18
    $region7: #{tpu_custom_call.1} parent=1 // loop_footer_branch
      %17 = sbr.rel target = $region3
    $region8: #{tpu_custom_call.1} parent=1 // loop_exit
      _
    %941 = vsyncpa [#allocation3], 1
    %s942 = scalar_lea.sflag [#allocation3], 1
    %943 = vsyncpa %s942, 1
    %944 = vsyncpa [#allocation4], 1
    %s945 = scalar_lea.sflag [#allocation4], 1
    %946 = vsyncpa %s945, 1

</llo_original>
